<compile_context>
chip_gen: v6e
topology: v6e:2x2x1
jax: 0.10.0
libtpu: 0.0.40
codegen_flags: <defaults>
</compile_context>

<pallas_src>
import functools

import numpy as np
import jax
import jax.numpy as jnp
from jax.experimental import pallas as pl
from jax.experimental.pallas import tpu as pltpu


def _nearest_selection(out_size: int, in_size: int) -> np.ndarray:
    """S[o, i] = 1 iff i == floor(o * in_size / out_size).

    Matches torch.nn.functional.interpolate(mode='nearest') (NOT 'nearest-exact').
    """
    src = np.minimum((np.arange(out_size) * in_size) // out_size, in_size - 1)
    sel = np.zeros((out_size, in_size), dtype=np.float32)
    sel[np.arange(out_size), src] = 1.0
    return sel


def _kron_selection_T(H, W, Hin, Win) -> np.ndarray:
    """Transposed Kronecker selection, shape (Hin*Win, H*W).

    x_flat @ S_T implements nearest resize (Hin, Win) -> (H, W) on row-major
    flattened spatial dims.
    """
    s = np.kron(_nearest_selection(H, Hin), _nearest_selection(W, Win))  # (H*W, Hin*Win)
    return np.ascontiguousarray(s.T)


def _resize_cat_kernel(x1_ref, x3_ref, x5_ref, s3_ref, s5_ref, out_ref,
                       *, nb, c1, c3, c5):
    # x1_ref: (nb*c1, HW)   x3_ref: (nb*c3, K3)   x5_ref: (nb*c5, K5)
    # s3_ref: (K3, HW)      s5_ref: (K5, HW)      out_ref: (nb*(c1+c3+c5), HW)
    out_dt = out_ref.dtype
    x1 = x1_ref[...].astype(out_dt)

    # One MXU push per source per grid step: batch is folded into the M dim,
    # and the result is already in the flattened lane-dense layout.
    r3 = jnp.dot(x3_ref[...], s3_ref[...],
                 preferred_element_type=jnp.float32).astype(out_dt)   # (nb*c3, HW)
    r5 = jnp.dot(x5_ref[...], s5_ref[...],
                 preferred_element_type=jnp.float32).astype(out_dt)   # (nb*c5, HW)

    # Assemble the batch-interleaved concat block in registers and issue a
    # single unmasked, lane-dense full-block store.
    pieces = []
    for b in range(nb):  # nb is a static block parameter -> unrolled at trace time
        pieces.append(x1[b * c1:(b + 1) * c1])
        pieces.append(r3[b * c3:(b + 1) * c3])
        pieces.append(r5[b * c5:(b + 1) * c5])
    out_ref[...] = jnp.concatenate(pieces, axis=0)


def _sublane_tile(dtype) -> int:
    """Sublane tile (8 for 4-byte, 16 for 2-byte, 32 for 1-byte dtypes)."""
    return 8 * max(1, 4 // jnp.dtype(dtype).itemsize)


def _tpu_vmem_budget():
    """Return (vmem_budget_bytes, vmem_cap_bytes, min_grid_steps), generation-aware."""
    vmem_cap = 128 << 20
    try:
        info = pltpu.get_tpu_info()
        vmem_cap = int(getattr(info, "vmem_capacity_bytes", vmem_cap))
    except Exception:
        pass
    kind = ""
    try:
        kind = jax.devices()[0].device_kind.lower()
    except Exception:
        pass
    # v7x: 64 MiB VMEM per TC, 2 TensorCores/chip -> keep >= 2 grid steps.
    # v5e/v6e: 1 TC, 128 MiB physical -> a single large block is fine.
    is_v7 = ("v7" in kind) or (vmem_cap <= (64 << 20))
    min_steps = 2 if is_v7 else 1
    budget = max(8 << 20, min(48 << 20, vmem_cap // 2))
    return budget, vmem_cap, min_steps


def resize_cat(at1, at3, at5):
    N, C1, H, W = at1.shape
    N3, C3, H3, W3 = at3.shape
    N5, C5, H5, W5 = at5.shape
    assert N3 == N and N5 == N
    C_out = C1 + C3 + C5
    HW, K3, K5 = H * W, H3 * W3, H5 * W5
    out_dtype = at1.dtype

    def _sel_dtype(x):
        return x.dtype if jnp.issubdtype(x.dtype, jnp.floating) else jnp.float32

    # 0/1 selection matrices are exact in the source dtype (one nonzero per row).
    s3T = jnp.asarray(_kron_selection_T(H, W, H3, W3), dtype=_sel_dtype(at3))  # (K3, HW)
    s5T = jnp.asarray(_kron_selection_T(H, W, H5, W5), dtype=_sel_dtype(at5))  # (K5, HW)

    # Row-flattened, lane-dense layouts (free reshapes: contiguous trailing dims).
    x1 = at1.reshape(N * C1, HW)
    x3 = at3.reshape(N * C3, K3)
    x5 = at5.reshape(N * C5, K5)

    itemsize = jnp.dtype(out_dtype).itemsize
    sub = _sublane_tile(out_dtype)

    def _padr(r):  # round rows up to the sublane tile
        return -(-r // sub) * sub

    def _padl(l):  # round lanes up to 128
        return -(-l // 128) * 128

    def _block_bytes(d):
        b = _padr(d * C1) * _padl(HW) + _padr(d * C3) * _padl(K3) + _padr(d * C5) * _padl(K5)
        b += _padr(d * C_out) * _padl(HW)
        return b * itemsize

    sel_bytes = (_padr(K3) + _padr(K5)) * _padl(HW) * jnp.dtype(s3T.dtype).itemsize

    budget, vmem_cap, min_steps = _tpu_vmem_budget()

    def _valid(d):
        # Mosaic block constraint: second-to-last block dim must be a multiple of
        # the sublane tile, or equal the full array dim (d == N covers the latter
        # for every row-flattened operand).
        return d == N or all((d * c) % sub == 0 for c in (C1, C3, C5, C_out))

    def _fits(d):
        # 2x: double-buffered I/O blocks. Selection matrices counted 2x as well
        # (conservative, in case the single-buffer fallback path is taken).
        return 2 * _block_bytes(d) + 2 * sel_bytes <= budget

    divisors = [d for d in range(1, N + 1) if N % d == 0 and _valid(d)]
    nb = None
    for d in divisors:                       # largest fitting block keeping >= min_steps
        if _fits(d) and (N // d) >= min_steps:
            nb = d
    if nb is None:                           # relax the min-steps requirement
        for d in divisors:
            if _fits(d):
                nb = d
    if nb is None:                           # nothing fits the budget: smallest valid block
        nb = divisors[0]

    vmem_limit = int(max(16 << 20,
                         min(vmem_cap, 2 * _block_bytes(nb) + 2 * sel_bytes + (4 << 20))))

    flops = 2 * N * (C3 * K3 + C5 * K5) * HW
    bytes_accessed = int((x1.size + x3.size + x5.size + N * C_out * HW) * itemsize
                         + s3T.size * jnp.dtype(s3T.dtype).itemsize
                         + s5T.size * jnp.dtype(s5T.dtype).itemsize)

    kernel = functools.partial(_resize_cat_kernel, nb=nb, c1=C1, c3=C3, c5=C5)

    def _call(single_buffer_sel):
        sel_mode = {}
        if single_buffer_sel and hasattr(pl, "Buffered"):
            # Grid-invariant selection matrices: no need for double buffering.
            sel_mode = dict(pipeline_mode=pl.Buffered(1))
        return pl.pallas_call(
            kernel,
            out_shape=jax.ShapeDtypeStruct((N * C_out, HW), out_dtype),
            grid=(N // nb,),
            in_specs=[
                pl.BlockSpec((nb * C1, HW), lambda i: (i, 0)),
                pl.BlockSpec((nb * C3, K3), lambda i: (i, 0)),
                pl.BlockSpec((nb * C5, K5), lambda i: (i, 0)),
                pl.BlockSpec((K3, HW), lambda i: (0, 0), **sel_mode),
                pl.BlockSpec((K5, HW), lambda i: (0, 0), **sel_mode),
            ],
            out_specs=pl.BlockSpec((nb * C_out, HW), lambda i: (i, 0)),
            compiler_params=pltpu.CompilerParams(
                dimension_semantics=("parallel",),
                vmem_limit_bytes=vmem_limit),
            cost_estimate=pl.CostEstimate(
                flops=flops, transcendentals=0, bytes_accessed=bytes_accessed),
        )(x1, x3, x5, s3T, s5T)

    try:
        out_flat = _call(True)
    except Exception:
        # pl.Buffered(1) (single-buffered grid-invariant inputs) not supported in
        # this jax build -> fall back to default double buffering.
        out_flat = _call(False)

    return out_flat.reshape(N, C_out, H, W)


def _reference(at1, at3, at5):
    """Pure-JAX reference mirroring torch.nn.functional.interpolate(mode='nearest')."""
    N, C1, H, W = at1.shape

    def nearest(x):
        _, _, h_in, w_in = x.shape
        hi = np.minimum((np.arange(H) * h_in) // H, h_in - 1)
        wi = np.minimum((np.arange(W) * w_in) // W, w_in - 1)
        return x[:, :, hi][:, :, :, wi]

    return jnp.concatenate([at1, nearest(at3), nearest(at5)], axis=1)


if __name__ == "__main__":
    key = jax.random.PRNGKey(0)
    k1, k3, k5 = jax.random.split(key, 3)

    N = 4
    at1 = jax.random.normal(k1, (N, 4, 16, 16), dtype=jnp.float32)
    at3 = jax.random.normal(k3, (N, 3, 8, 8), dtype=jnp.float32)
    at5 = jax.random.normal(k5, (N, 5, 12, 12), dtype=jnp.float32)

    out = jax.block_until_ready(resize_cat(at1, at3, at5))

    ref = _reference(at1, at3, at5)
    assert out.shape == (N, 4 + 3 + 5, 16, 16), out.shape
    np.testing.assert_allclose(np.asarray(out), np.asarray(ref), rtol=1e-5, atol=1e-5)

    print("KERNEL_OK")
</pallas_src>

<mosaic_0001>
module attributes {stable_mosaic.version = 11 : i64} {
  func.func @_resize_cat_kernel(%arg0: i32, %arg1: memref<16x256xf32, #tpu.memory_space<vmem>>, %arg2: memref<12x64xf32, #tpu.memory_space<vmem>>, %arg3: memref<20x144xf32, #tpu.memory_space<vmem>>, %arg4: memref<64x256xf32, #tpu.memory_space<vmem>>, %arg5: memref<144x256xf32, #tpu.memory_space<vmem>>, %arg6: memref<48x256xf32, #tpu.memory_space<vmem>>) attributes {dimension_semantics = [#tpu.dimension_semantics<parallel>], iteration_bounds = array<i64: 1>, scalar_prefetch = 0 : i64, scratch_operands = 0 : i64, tpu.core_type = #tpu.core_type<tc>, window_params = [{transform_indices = @transform_0, window_bounds = array<i64: 16, 256>}, {transform_indices = @transform_1, window_bounds = array<i64: 12, 64>}, {transform_indices = @transform_2, window_bounds = array<i64: 20, 144>}, {pipeline_mode = #tpu.pipeline_mode<synchronous>, transform_indices = @transform_3, window_bounds = array<i64: 64, 256>}, {pipeline_mode = #tpu.pipeline_mode<synchronous>, transform_indices = @transform_4, window_bounds = array<i64: 144, 256>}, {transform_indices = @transform_5, window_bounds = array<i64: 48, 256>}]} {
    %c0 = arith.constant 0 : index
    %c0_0 = arith.constant 0 : index
    %0 = vector.load %arg1[%c0, %c0_0] : memref<16x256xf32, #tpu.memory_space<vmem>>, vector<16x256xf32>
    %c0_1 = arith.constant 0 : index
    %c0_2 = arith.constant 0 : index
    %1 = vector.load %arg2[%c0_1, %c0_2] : memref<12x64xf32, #tpu.memory_space<vmem>>, vector<12x64xf32>
    %c0_3 = arith.constant 0 : index
    %c0_4 = arith.constant 0 : index
    %2 = vector.load %arg4[%c0_3, %c0_4] : memref<64x256xf32, #tpu.memory_space<vmem>>, vector<64x256xf32>
    %cst = arith.constant dense<0.000000e+00> : vector<12x256xf32>
    %3 = tpu.matmul %1, %2, %cst {dimension_numbers = #tpu.dot_dimension_numbers<[1], [0], [0], [1], [0, 0, 1, 1], [], []>} : vector<12x64xf32>, vector<64x256xf32>, vector<12x256xf32> -> vector<12x256xf32>
    %c0_5 = arith.constant 0 : index
    %c0_6 = arith.constant 0 : index
    %4 = vector.load %arg3[%c0_5, %c0_6] : memref<20x144xf32, #tpu.memory_space<vmem>>, vector<20x144xf32>
    %c0_7 = arith.constant 0 : index
    %c0_8 = arith.constant 0 : index
    %5 = vector.load %arg5[%c0_7, %c0_8] : memref<144x256xf32, #tpu.memory_space<vmem>>, vector<144x256xf32>
    %cst_9 = arith.constant dense<0.000000e+00> : vector<20x256xf32>
    %6 = tpu.matmul %4, %5, %cst_9 {dimension_numbers = #tpu.dot_dimension_numbers<[1], [0], [0], [1], [0, 0, 1, 1], [], []>} : vector<20x144xf32>, vector<144x256xf32>, vector<20x256xf32> -> vector<20x256xf32>
    %7 = vector.extract_strided_slice %0 {offsets = [0, 0], sizes = [4, 256], strides = [1, 1]} : vector<16x256xf32> to vector<4x256xf32>
    %8 = vector.extract_strided_slice %3 {offsets = [0, 0], sizes = [3, 256], strides = [1, 1]} : vector<12x256xf32> to vector<3x256xf32>
    %9 = vector.extract_strided_slice %6 {offsets = [0, 0], sizes = [5, 256], strides = [1, 1]} : vector<20x256xf32> to vector<5x256xf32>
    %10 = vector.extract_strided_slice %0 {offsets = [4, 0], sizes = [4, 256], strides = [1, 1]} : vector<16x256xf32> to vector<4x256xf32>
    %11 = vector.extract_strided_slice %3 {offsets = [3, 0], sizes = [3, 256], strides = [1, 1]} : vector<12x256xf32> to vector<3x256xf32>
    %12 = vector.extract_strided_slice %6 {offsets = [5, 0], sizes = [5, 256], strides = [1, 1]} : vector<20x256xf32> to vector<5x256xf32>
    %13 = vector.extract_strided_slice %0 {offsets = [8, 0], sizes = [4, 256], strides = [1, 1]} : vector<16x256xf32> to vector<4x256xf32>
    %14 = vector.extract_strided_slice %3 {offsets = [6, 0], sizes = [3, 256], strides = [1, 1]} : vector<12x256xf32> to vector<3x256xf32>
    %15 = vector.extract_strided_slice %6 {offsets = [10, 0], sizes = [5, 256], strides = [1, 1]} : vector<20x256xf32> to vector<5x256xf32>
    %16 = vector.extract_strided_slice %0 {offsets = [12, 0], sizes = [4, 256], strides = [1, 1]} : vector<16x256xf32> to vector<4x256xf32>
    %17 = vector.extract_strided_slice %3 {offsets = [9, 0], sizes = [3, 256], strides = [1, 1]} : vector<12x256xf32> to vector<3x256xf32>
    %18 = vector.extract_strided_slice %6 {offsets = [15, 0], sizes = [5, 256], strides = [1, 1]} : vector<20x256xf32> to vector<5x256xf32>
    %19 = tpu.concatenate %7, %8, %9, %10, %11, %12, %13, %14, %15, %16, %17, %18 in 0 : vector<4x256xf32>, vector<3x256xf32>, vector<5x256xf32>, vector<4x256xf32>, vector<3x256xf32>, vector<5x256xf32>, vector<4x256xf32>, vector<3x256xf32>, vector<5x256xf32>, vector<4x256xf32>, vector<3x256xf32>, vector<5x256xf32> -> vector<48x256xf32>
    %c0_10 = arith.constant 0 : index
    %c0_11 = arith.constant 0 : index
    %20 = vector.load %arg6[%c0_10, %c0_11] : memref<48x256xf32, #tpu.memory_space<vmem>>, vector<48x256xf32>
    tpu.vector_store %arg6[%c0_10, %c0_11], %19 {strides = array<i32>} : memref<48x256xf32, #tpu.memory_space<vmem>>, vector<48x256xf32>,
    return
  }
  func.func @transform_0(%arg0: i32) -> (i32, i32) {
    %c0_i32 = arith.constant 0 : i32
    %c0_i32_0 = arith.constant 0 : i32
    return %arg0, %c0_i32 : i32, i32
  }
  func.func @transform_1(%arg0: i32) -> (i32, i32) {
    %c0_i32 = arith.constant 0 : i32
    %c0_i32_0 = arith.constant 0 : i32
    return %arg0, %c0_i32 : i32, i32
  }
  func.func @transform_2(%arg0: i32) -> (i32, i32) {
    %c0_i32 = arith.constant 0 : i32
    %c0_i32_0 = arith.constant 0 : i32
    return %arg0, %c0_i32 : i32, i32
  }
  func.func @transform_3(%arg0: i32) -> (i32, i32) {
    %c0_i32 = arith.constant 0 : i32
    %c0_i32_0 = arith.constant 0 : i32
    %c0_i32_1 = arith.constant 0 : i32
    return %c0_i32, %c0_i32_0 : i32, i32
  }
  func.func @transform_4(%arg0: i32) -> (i32, i32) {
    %c0_i32 = arith.constant 0 : i32
    %c0_i32_0 = arith.constant 0 : i32
    %c0_i32_1 = arith.constant 0 : i32
    return %c0_i32, %c0_i32_0 : i32, i32
  }
  func.func @transform_5(%arg0: i32) -> (i32, i32) {
    %c0_i32 = arith.constant 0 : i32
    %c0_i32_0 = arith.constant 0 : i32
    return %arg0, %c0_i32 : i32, i32
  }
}

module attributes {stable_mosaic.version = 11 : i64} {
  func.func @_resize_cat_kernel(%arg0: i32, %arg1: memref<16x256xf32, #tpu.memory_space<vmem>>, %arg2: memref<12x64xf32, #tpu.memory_space<vmem>>, %arg3: memref<20x144xf32, #tpu.memory_space<vmem>>, %arg4: memref<64x256xf32, #tpu.memory_space<vmem>>, %arg5: memref<144x256xf32, #tpu.memory_space<vmem>>, %arg6: memref<48x256xf32, #tpu.memory_space<vmem>>) attributes {dimension_semantics = [#tpu.dimension_semantics<parallel>], iteration_bounds = array<i64: 1>, scalar_prefetch = 0 : i64, scratch_operands = 0 : i64, tpu.core_type = #tpu.core_type<tc>, window_params = [{transform_indices = @transform_0, window_bounds = array<i64: 16, 256>}, {transform_indices = @transform_1, window_bounds = array<i64: 12, 64>}, {transform_indices = @transform_2, window_bounds = array<i64: 20, 144>}, {pipeline_mode = #tpu.pipeline_mode<synchronous>, transform_indices = @transform_3, window_bounds = array<i64: 64, 256>}, {pipeline_mode = #tpu.pipeline_mode<synchronous>, transform_indices = @transform_4, window_bounds = array<i64: 144, 256>}, {transform_indices = @transform_5, window_bounds = array<i64: 48, 256>}]} {
    %c0 = arith.constant 0 : index
    %c0_0 = arith.constant 0 : index
    %0 = vector.load %arg1[%c0, %c0_0] : memref<16x256xf32, #tpu.memory_space<vmem>>, vector<16x256xf32>
    %c0_1 = arith.constant 0 : index
    %c0_2 = arith.constant 0 : index
    %1 = vector.load %arg2[%c0_1, %c0_2] : memref<12x64xf32, #tpu.memory_space<vmem>>, vector<12x64xf32>
    %c0_3 = arith.constant 0 : index
    %c0_4 = arith.constant 0 : index
    %2 = vector.load %arg4[%c0_3, %c0_4] : memref<64x256xf32, #tpu.memory_space<vmem>>, vector<64x256xf32>
    %cst = arith.constant dense<0.000000e+00> : vector<12x256xf32>
    %3 = tpu.matmul %1, %2, %cst {dimension_numbers = #tpu.dot_dimension_numbers<[1], [0], [0], [1], [0, 0, 1, 1], [], []>} : vector<12x64xf32>, vector<64x256xf32>, vector<12x256xf32> -> vector<12x256xf32>
    %c0_5 = arith.constant 0 : index
    %c0_6 = arith.constant 0 : index
    %4 = vector.load %arg3[%c0_5, %c0_6] : memref<20x144xf32, #tpu.memory_space<vmem>>, vector<20x144xf32>
    %c0_7 = arith.constant 0 : index
    %c0_8 = arith.constant 0 : index
    %5 = vector.load %arg5[%c0_7, %c0_8] : memref<144x256xf32, #tpu.memory_space<vmem>>, vector<144x256xf32>
    %cst_9 = arith.constant dense<0.000000e+00> : vector<20x256xf32>
    %6 = tpu.matmul %4, %5, %cst_9 {dimension_numbers = #tpu.dot_dimension_numbers<[1], [0], [0], [1], [0, 0, 1, 1], [], []>} : vector<20x144xf32>, vector<144x256xf32>, vector<20x256xf32> -> vector<20x256xf32>
    %7 = vector.extract_strided_slice %0 {offsets = [0, 0], sizes = [4, 256], strides = [1, 1]} : vector<16x256xf32> to vector<4x256xf32>
    %8 = vector.extract_strided_slice %3 {offsets = [0, 0], sizes = [3, 256], strides = [1, 1]} : vector<12x256xf32> to vector<3x256xf32>
    %9 = vector.extract_strided_slice %6 {offsets = [0, 0], sizes = [5, 256], strides = [1, 1]} : vector<20x256xf32> to vector<5x256xf32>
    %10 = vector.extract_strided_slice %0 {offsets = [4, 0], sizes = [4, 256], strides = [1, 1]} : vector<16x256xf32> to vector<4x256xf32>
    %11 = vector.extract_strided_slice %3 {offsets = [3, 0], sizes = [3, 256], strides = [1, 1]} : vector<12x256xf32> to vector<3x256xf32>
    %12 = vector.extract_strided_slice %6 {offsets = [5, 0], sizes = [5, 256], strides = [1, 1]} : vector<20x256xf32> to vector<5x256xf32>
    %13 = vector.extract_strided_slice %0 {offsets = [8, 0], sizes = [4, 256], strides = [1, 1]} : vector<16x256xf32> to vector<4x256xf32>
    %14 = vector.extract_strided_slice %3 {offsets = [6, 0], sizes = [3, 256], strides = [1, 1]} : vector<12x256xf32> to vector<3x256xf32>
    %15 = vector.extract_strided_slice %6 {offsets = [10, 0], sizes = [5, 256], strides = [1, 1]} : vector<20x256xf32> to vector<5x256xf32>
    %16 = vector.extract_strided_slice %0 {offsets = [12, 0], sizes = [4, 256], strides = [1, 1]} : vector<16x256xf32> to vector<4x256xf32>
    %17 = vector.extract_strided_slice %3 {offsets = [9, 0], sizes = [3, 256], strides = [1, 1]} : vector<12x256xf32> to vector<3x256xf32>
    %18 = vector.extract_strided_slice %6 {offsets = [15, 0], sizes = [5, 256], strides = [1, 1]} : vector<20x256xf32> to vector<5x256xf32>
    %19 = tpu.concatenate %7, %8, %9, %10, %11, %12, %13, %14, %15, %16, %17, %18 in 0 : vector<4x256xf32>, vector<3x256xf32>, vector<5x256xf32>, vector<4x256xf32>, vector<3x256xf32>, vector<5x256xf32>, vector<4x256xf32>, vector<3x256xf32>, vector<5x256xf32>, vector<4x256xf32>, vector<3x256xf32>, vector<5x256xf32> -> vector<48x256xf32>
    %c0_10 = arith.constant 0 : index
    %c0_11 = arith.constant 0 : index
    %20 = vector.load %arg6[%c0_10, %c0_11] : memref<48x256xf32, #tpu.memory_space<vmem>>, vector<48x256xf32>
    tpu.vector_store %arg6[%c0_10, %c0_11], %19 {strides = array<i32>} : memref<48x256xf32, #tpu.memory_space<vmem>>, vector<48x256xf32>,
    return
  }
  func.func @transform_0(%arg0: i32) -> (i32, i32) {
    %c0_i32 = arith.constant 0 : i32
    %c0_i32_0 = arith.constant 0 : i32
    return %arg0, %c0_i32 : i32, i32
  }
  func.func @transform_1(%arg0: i32) -> (i32, i32) {
    %c0_i32 = arith.constant 0 : i32
    %c0_i32_0 = arith.constant 0 : i32
    return %arg0, %c0_i32 : i32, i32
  }
  func.func @transform_2(%arg0: i32) -> (i32, i32) {
    %c0_i32 = arith.constant 0 : i32
    %c0_i32_0 = arith.constant 0 : i32
    return %arg0, %c0_i32 : i32, i32
  }
  func.func @transform_3(%arg0: i32) -> (i32, i32) {
    %c0_i32 = arith.constant 0 : i32
    %c0_i32_0 = arith.constant 0 : i32
    %c0_i32_1 = arith.constant 0 : i32
    return %c0_i32, %c0_i32_0 : i32, i32
  }
  func.func @transform_4(%arg0: i32) -> (i32, i32) {
    %c0_i32 = arith.constant 0 : i32
    %c0_i32_0 = arith.constant 0 : i32
    %c0_i32_1 = arith.constant 0 : i32
    return %c0_i32, %c0_i32_0 : i32, i32
  }
  func.func @transform_5(%arg0: i32) -> (i32, i32) {
    %c0_i32 = arith.constant 0 : i32
    %c0_i32_0 = arith.constant 0 : i32
    return %arg0, %c0_i32 : i32, i32
  }
}

</mosaic_0001>

<llo_original>
// kernel: tpu_custom_call.1
$region0: #{tpu_custom_call.1}
  #allocation0 [shape = 'u32[]', space=smem, size = 0x4, offset = 0x4, fixed_abs, tag = 'smem constant byte address 0x4 - core index']
  #allocation1 [shape = 'u32[144,128]{1,0:T(1,128)}', space=vmem, size = 0x12000, scoped, tag = 'internal scratch']
  %s0 = inlined_call_operand.hbm [shape: f32[16,256], index: 0, kind: input, shape index: {}]
  %s1 = inlined_call_operand.hbm [shape: f32[12,64], index: 1, kind: input, shape index: {}]
  %s2 = inlined_call_operand.hbm [shape: f32[20,144], index: 2, kind: input, shape index: {}]
  %s3 = inlined_call_operand.hbm [shape: f32[64,256], index: 3, kind: input, shape index: {}]
  %s4 = inlined_call_operand.hbm [shape: f32[144,256], index: 4, kind: input, shape index: {}]
  %s5 = inlined_call_operand.hbm [shape: f32[48,256], index: 5, kind: output, shape index: {}]
  %s6 = sld [smem:[#allocation0]]
  $region50: #{tpu_custom_call.1} parent=0
    _
  %s8 = ssub.s32 1, %s6
  %s9 = scalar_select 0, %s8, %s6
  $region1: #{tpu_custom_call.1} parent=0
    #allocation2 [shape = 'u8[16384]{0}', space=vmem, size = 0x4000, scoped, tag = 'input window, operand 0, single buffered']
    #allocation3 [shape = 's32[1]{0}', space=sflag, size = 0x4, scoped, tag = 'scoped memory for tpu_custom_call.1']
    #allocation4 [shape = 's32[1]{0}', space=sflag, size = 0x4, scoped, tag = 'scoped memory for tpu_custom_call.1']
    #allocation5 [shape = 'u8[8192]{0}', space=vmem, size = 0x2000, scoped, tag = 'input window, operand 1, single buffered']
    #allocation6 [shape = 's32[1]{0}', space=sflag, size = 0x4, scoped, tag = 'scoped memory for tpu_custom_call.1']
    #allocation7 [shape = 'u8[24576]{0}', space=vmem, size = 0x6000, scoped, tag = 'input window, operand 2, single buffered']
    #allocation8 [shape = 'u8[65536]{0}', space=vmem, size = 0x10000, scoped, tag = 'input window, operand 3, single buffered']
    #allocation9 [shape = 's32[1]{0}', space=sflag, size = 0x4, scoped, tag = 'scoped memory for tpu_custom_call.1']
    #allocation10 [shape = 'u8[147456]{0}', space=vmem, size = 0x24000, scoped, tag = 'input window, operand 4, single buffered']
    #allocation11 [shape = 'u8[49152]{0}', space=vmem, size = 0xc000, scoped, tag = 'output window, operand 0, single buffered']
    %10 = vsyncpa [#allocation3], 0
    %11 = vsyncpa [#allocation6], 0
    %12 = vsyncpa [#allocation9], 0
    %13 = vsyncpa [#allocation4], 0
    // Predicated region
    $region2: #{tpu_custom_call.1} parent=1 // pred_check
      _
    $region3: #{tpu_custom_call.1} parent=1 // pred_check_branch
      %15 = sbr.rel (0) target = $region5
    $region4: #{tpu_custom_call.1} parent=1 // pred_region
      %s17 = ssub.s32 512, 512
      %18 = vsyncadd [#allocation3], %s17
      %s19 = sshll.u32 [#allocation2], 4
      %s20 = int_to_ptr.vmem [resolvable:$true] %s19
      %25 = dma.hbm_to_vmem [thread:$0]  %s0, 512, %s20, [#allocation3], 256, 256, 16
    $region5: #{tpu_custom_call.1} parent=1 // pred_fallthru
      _
    // Predicated region
    $region6: #{tpu_custom_call.1} parent=1 // pred_check
      _
    $region7: #{tpu_custom_call.1} parent=1 // pred_check_branch
      %27 = sbr.rel (0) target = $region9
    $region8: #{tpu_custom_call.1} parent=1 // pred_region
      %s29 = ssub.s32 256, 256
      %30 = vsyncadd [#allocation6], %s29
      %s31 = sshll.u32 [#allocation5], 4
      %s32 = int_to_ptr.vmem [resolvable:$true] %s31
      %37 = dma.hbm_to_vmem [thread:$0]  %s1, 256, %s32, [#allocation6], 128, 128, 8
    $region9: #{tpu_custom_call.1} parent=1 // pred_fallthru
      _
    // Predicated region
    $region10: #{tpu_custom_call.1} parent=1 // pred_check
      _
    $region11: #{tpu_custom_call.1} parent=1 // pred_check_branch
      %39 = sbr.rel (0) target = $region13
    $region12: #{tpu_custom_call.1} parent=1 // pred_region
      %s41 = ssub.s32 768, 768
      %42 = vsyncadd [#allocation6], %s41
      %s43 = sshll.u32 [#allocation7], 4
      %s44 = int_to_ptr.vmem [resolvable:$true] %s43
      %49 = dma.hbm_to_vmem [thread:$0]  %s2, 768, %s44, [#allocation6], 256, 256, 16
    $region13: #{tpu_custom_call.1} parent=1 // pred_fallthru
      _
    // Predicated region
    $region14: #{tpu_custom_call.1} parent=1 // pred_check
      _
    $region15: #{tpu_custom_call.1} parent=1 // pred_check_branch
      %51 = sbr.rel (0) target = $region17
    $region16: #{tpu_custom_call.1} parent=1 // pred_region
      %s53 = ssub.s32 2048, 2048
      %54 = vsyncadd [#allocation9], %s53
      %s55 = sshll.u32 [#allocation8], 4
      %s56 = int_to_ptr.vmem [resolvable:$true] %s55
      %61 = dma.hbm_to_vmem [thread:$0]  %s3, 2048, %s56, [#allocation9], 256, 256, 16
    $region17: #{tpu_custom_call.1} parent=1 // pred_fallthru
      _
    // Predicated region
    $region18: #{tpu_custom_call.1} parent=1 // pred_check
      _
    $region19: #{tpu_custom_call.1} parent=1 // pred_check_branch
      %63 = sbr.rel (0) target = $region21
    $region20: #{tpu_custom_call.1} parent=1 // pred_region
      %s65 = ssub.s32 4608, 4608
      %66 = vsyncadd [#allocation9], %s65
      %s67 = sshll.u32 [#allocation10], 4
      %s68 = int_to_ptr.vmem [resolvable:$true] %s67
      %73 = dma.hbm_to_vmem [thread:$0]  %s4, 4608, %s68, [#allocation9], 256, 256, 16
    $region21: #{tpu_custom_call.1} parent=1 // pred_fallthru
      _
    // Predicated region
    $region22: #{tpu_custom_call.1} parent=1 // pred_check
      _
    $region23: #{tpu_custom_call.1} parent=1 // pred_check_branch
      %75 = sbr.rel (0) target = $region25
    $region24: #{tpu_custom_call.1} parent=1 // pred_region
      %76 = dma.done [#allocation3], 512
    $region25: #{tpu_custom_call.1} parent=1 // pred_fallthru
      _
    // Predicated region
    $region26: #{tpu_custom_call.1} parent=1 // pred_check
      _
    $region27: #{tpu_custom_call.1} parent=1 // pred_check_branch
      %78 = sbr.rel (0) target = $region29
    $region28: #{tpu_custom_call.1} parent=1 // pred_region
      %79 = dma.done [#allocation6], 256
    $region29: #{tpu_custom_call.1} parent=1 // pred_fallthru
      _
    // Predicated region
    $region30: #{tpu_custom_call.1} parent=1 // pred_check
      _
    $region31: #{tpu_custom_call.1} parent=1 // pred_check_branch
      %81 = sbr.rel (0) target = $region33
    $region32: #{tpu_custom_call.1} parent=1 // pred_region
      %82 = dma.done [#allocation6], 768
    $region33: #{tpu_custom_call.1} parent=1 // pred_fallthru
      _
    // Predicated region
    $region34: #{tpu_custom_call.1} parent=1 // pred_check
      _
    $region35: #{tpu_custom_call.1} parent=1 // pred_check_branch
      %84 = sbr.rel (0) target = $region37
    $region36: #{tpu_custom_call.1} parent=1 // pred_region
      %85 = dma.done [#allocation9], 2048
    $region37: #{tpu_custom_call.1} parent=1 // pred_fallthru
      _
    // Predicated region
    $region38: #{tpu_custom_call.1} parent=1 // pred_check
      _
    $region39: #{tpu_custom_call.1} parent=1 // pred_check_branch
      %87 = sbr.rel (0) target = $region41
    $region40: #{tpu_custom_call.1} parent=1 // pred_region
      %88 = dma.done [#allocation9], 4608
    $region41: #{tpu_custom_call.1} parent=1 // pred_fallthru
      _
    %v89 = vld [vmem:[#allocation2] sm:$0xff]
    %v90 = vld [vmem:[#allocation2 + $0x8] sm:$0xff]
    %v91 = vld [vmem:[#allocation2 + $0x10] sm:$0xff]
    %v92 = vld [vmem:[#allocation2 + $0x18] sm:$0xff]
    %v93 = vld [vmem:[#allocation5] sm:$0xff]
    %v94 = vld [vmem:[#allocation5 + $0x8] sm:$0xf]
    %v95 = vld [vmem:[#allocation8] sm:$0xff]
    %v96 = vld [vmem:[#allocation8 + $0x8] sm:$0xff]
    %v97 = vld [vmem:[#allocation8 + $0x10] sm:$0xff]
    %v98 = vld [vmem:[#allocation8 + $0x18] sm:$0xff]
    %v99 = vld [vmem:[#allocation8 + $0x20] sm:$0xff]
    %v100 = vld [vmem:[#allocation8 + $0x28] sm:$0xff]
    %v101 = vld [vmem:[#allocation8 + $0x30] sm:$0xff]
    %v102 = vld [vmem:[#allocation8 + $0x38] sm:$0xff]
    %v103 = vld [vmem:[#allocation8 + $0x40] sm:$0xff]
    %v104 = vld [vmem:[#allocation8 + $0x48] sm:$0xff]
    %v105 = vld [vmem:[#allocation8 + $0x50] sm:$0xff]
    %v106 = vld [vmem:[#allocation8 + $0x58] sm:$0xff]
    %v107 = vld [vmem:[#allocation8 + $0x60] sm:$0xff]
    %v108 = vld [vmem:[#allocation8 + $0x68] sm:$0xff]
    %v109 = vld [vmem:[#allocation8 + $0x70] sm:$0xff]
    %v110 = vld [vmem:[#allocation8 + $0x78] sm:$0xff]
    %vm111 = vcmask 523264
    %v113 = vsel %vm111, %v93, 0
    %v116 = vsel %vm111, %v94, 0
    %118 = vmatprep.subr.mxu0 0.0
    %119 = vmatpush1.msra.mxu0 0.0
    %120 = vmatprep.subr.mxu0 0.0
    %121 = vmatpush1.msra.mxu0 0.0
    %122 = vmatprep.subr.mxu0 0.0
    %123 = vmatpush1.msra.mxu0 0.0
    %124 = vmatprep.subr.mxu0 0.0
    %125 = vmatpush1.msra.mxu0 0.0
    %126 = vmatprep.subr.mxu0 0.0
    %127 = vmatpush1.msra.mxu0 0.0
    %128 = vmatprep.subr.mxu0 0.0
    %129 = vmatpush1.msra.mxu0 0.0
    %130 = vmatprep.subr.mxu0 0.0
    %131 = vmatpush1.msra.mxu0 0.0
    %132 = vmatprep.subr.mxu0 0.0
    %133 = vmatpush1.msra.mxu0 0.0
    %134 = vmatprep.subr.mxu0 %v110
    %135 = vmatpush1.msra.mxu0 %v109
    %136 = vmatprep.subr.mxu0 %v108
    %137 = vmatpush1.msra.mxu0 %v107
    %138 = vmatprep.subr.mxu0 %v106
    %139 = vmatpush1.msra.mxu0 %v105
    %140 = vmatprep.subr.mxu0 %v104
    %141 = vmatpush1.msra.mxu0 %v103
    %142 = vmatprep.subr.mxu0 %v102
    %143 = vmatpush1.msra.mxu0 %v101
    %144 = vmatprep.subr.mxu0 %v100
    %145 = vmatpush1.msra.mxu0 %v99
    %146 = vmatprep.subr.mxu0 %v98
    %147 = vmatpush1.msra.mxu0 %v97
    %148 = vmatprep.subr.mxu0 %v96
    %149 = vmatpush1.msra.mxu0 %v95
    %150 = vmatprep.subr.mxu0 0.0
    %151 = vmatpush2.msra.mxu0 0.0
    %152 = vmatprep.subr.mxu0 0.0
    %153 = vmatpush2.msra.mxu0 0.0
    %154 = vmatprep.subr.mxu0 0.0
    %155 = vmatpush2.msra.mxu0 0.0
    %156 = vmatprep.subr.mxu0 0.0
    %157 = vmatpush2.msra.mxu0 0.0
    %158 = vmatprep.subr.mxu0 0.0
    %159 = vmatpush2.msra.mxu0 0.0
    %160 = vmatprep.subr.mxu0 0.0
    %161 = vmatpush2.msra.mxu0 0.0
    %162 = vmatprep.subr.mxu0 0.0
    %163 = vmatpush2.msra.mxu0 0.0
    %164 = vmatprep.subr.mxu0 0.0
    %165 = vmatpush2.msra.mxu0 0.0
    %166 = vmatprep.subr.mxu0 0.0
    %167 = vmatpush2.msra.mxu0 0.0
    %168 = vmatprep.subr.mxu0 0.0
    %169 = vmatpush2.msra.mxu0 0.0
    %170 = vmatprep.subr.mxu0 0.0
    %171 = vmatpush2.msra.mxu0 0.0
    %172 = vmatprep.subr.mxu0 0.0
    %173 = vmatpush2.msra.mxu0 0.0
    %174 = vmatprep.subr.mxu0 0.0
    %175 = vmatpush2.msra.mxu0 0.0
    %176 = vmatprep.subr.mxu0 0.0
    %177 = vmatpush2.msra.mxu0 0.0
    %178 = vmatprep.subr.mxu0 0.0
    %179 = vmatpush2.msra.mxu0 0.0
    %180 = vmatprep.subr.mxu0 0.0
    %181 = vmatpush2.msra.mxu0 0.0
    %182 = vmatprep.mubr.f32.mxu0 0.0
    %183 = vmatmul.mubr.f32.gmra.mxu0 %v113
    %v184 = vpop.f32.mrf.mxu0
    %v185 = vadd.f32 0.0, %v184
    %v186 = vpop.f32.mrf.mxu0
    %v187 = vadd.f32 0.0, %v186
    %188 = vmatprep.mubr.f32.mxu0 0.0
    %189 = vmatmul.mubr.f32.gmra.mxu0 %v116
    %v190 = vpop.f32.mrf.mxu0
    %v191 = vadd.f32 0.0, %v190
    %v192 = vpop.f32.mrf.mxu0
    %v193 = vadd.f32 0.0, %v192
    %194 = vdwg.mxu0
    %v195 = vld [vmem:[#allocation7] sm:$0xff]
    %v196 = vld [vmem:[#allocation7 + $0x8] sm:$0xff]
    %v197 = vld [vmem:[#allocation7 + $0x10] sm:$0xff]
    %v198 = vld [vmem:[#allocation7 + $0x18] sm:$0xff]
    %v199 = vld [vmem:[#allocation7 + $0x20] sm:$0xf]
    %v200 = vld [vmem:[#allocation7 + $0x28] sm:$0xf]
    %v201 = vld [vmem:[#allocation10] sm:$0xff]
    %v202 = vld [vmem:[#allocation10 + $0x8] sm:$0xff]
    %v203 = vld [vmem:[#allocation10 + $0x10] sm:$0xff]
    %v204 = vld [vmem:[#allocation10 + $0x18] sm:$0xff]
    %v205 = vld [vmem:[#allocation10 + $0x20] sm:$0xff]
    %v206 = vld [vmem:[#allocation10 + $0x28] sm:$0xff]
    %v207 = vld [vmem:[#allocation10 + $0x30] sm:$0xff]
    %v208 = vld [vmem:[#allocation10 + $0x38] sm:$0xff]
    %v209 = vld [vmem:[#allocation10 + $0x40] sm:$0xff]
    %v210 = vld [vmem:[#allocation10 + $0x48] sm:$0xff]
    %v211 = vld [vmem:[#allocation10 + $0x50] sm:$0xff]
    %v212 = vld [vmem:[#allocation10 + $0x58] sm:$0xff]
    %v213 = vld [vmem:[#allocation10 + $0x60] sm:$0xff]
    %v214 = vld [vmem:[#allocation10 + $0x68] sm:$0xff]
    %v215 = vld [vmem:[#allocation10 + $0x70] sm:$0xff]
    %v216 = vld [vmem:[#allocation10 + $0x78] sm:$0xff]
    %v217 = vld [vmem:[#allocation10 + $0x80] sm:$0xff]
    %v218 = vld [vmem:[#allocation10 + $0x88] sm:$0xff]
    %v219 = vld [vmem:[#allocation10 + $0x90] sm:$0xff]
    %v220 = vld [vmem:[#allocation10 + $0x98] sm:$0xff]
    %v221 = vld [vmem:[#allocation10 + $0xa0] sm:$0xff]
    %v222 = vld [vmem:[#allocation10 + $0xa8] sm:$0xff]
    %v223 = vld [vmem:[#allocation10 + $0xb0] sm:$0xff]
    %v224 = vld [vmem:[#allocation10 + $0xb8] sm:$0xff]
    %v225 = vld [vmem:[#allocation10 + $0xc0] sm:$0xff]
    %v226 = vld [vmem:[#allocation10 + $0xc8] sm:$0xff]
    %v227 = vld [vmem:[#allocation10 + $0xd0] sm:$0xff]
    %v228 = vld [vmem:[#allocation10 + $0xd8] sm:$0xff]
    %v229 = vld [vmem:[#allocation10 + $0xe0] sm:$0xff]
    %v230 = vld [vmem:[#allocation10 + $0xe8] sm:$0xff]
    %v231 = vld [vmem:[#allocation10 + $0xf0] sm:$0xff]
    %v232 = vld [vmem:[#allocation10 + $0xf8] sm:$0xff]
    %v233 = vld [vmem:[#allocation10 + $0x100] sm:$0xff]
    %v234 = vld [vmem:[#allocation10 + $0x108] sm:$0xff]
    %v235 = vld [vmem:[#allocation10 + $0x110] sm:$0xff]
    %v236 = vld [vmem:[#allocation10 + $0x118] sm:$0xff]
    %vm237 = vcmask 130048
    %v239 = vsel %vm237, %v196, 0
    %v242 = vsel %vm237, %v198, 0
    %v245 = vsel %vm237, %v200, 0
    %247 = vmatprep.subr.mxu0 %v232
    %248 = vmatpush1.msra.mxu0 %v231
    %249 = vmatprep.subr.mxu0 %v230
    %250 = vmatpush1.msra.mxu0 %v229
    %251 = vmatprep.subr.mxu0 %v228
    %252 = vmatpush1.msra.mxu0 %v227
    %253 = vmatprep.subr.mxu0 %v226
    %254 = vmatpush1.msra.mxu0 %v225
    %255 = vmatprep.subr.mxu0 %v224
    %256 = vmatpush1.msra.mxu0 %v223
    %257 = vmatprep.subr.mxu0 %v222
    %258 = vmatpush1.msra.mxu0 %v221
    %259 = vmatprep.subr.mxu0 %v220
    %260 = vmatpush1.msra.mxu0 %v219
    %261 = vmatprep.subr.mxu0 %v218
    %262 = vmatpush1.msra.mxu0 %v217
    %263 = vmatprep.subr.mxu0 %v216
    %264 = vmatpush1.msra.mxu0 %v215
    %265 = vmatprep.subr.mxu0 %v214
    %266 = vmatpush1.msra.mxu0 %v213
    %267 = vmatprep.subr.mxu0 %v212
    %268 = vmatpush1.msra.mxu0 %v211
    %269 = vmatprep.subr.mxu0 %v210
    %270 = vmatpush1.msra.mxu0 %v209
    %271 = vmatprep.subr.mxu0 %v208
    %272 = vmatpush1.msra.mxu0 %v207
    %273 = vmatprep.subr.mxu0 %v206
    %274 = vmatpush1.msra.mxu0 %v205
    %275 = vmatprep.subr.mxu0 %v204
    %276 = vmatpush1.msra.mxu0 %v203
    %277 = vmatprep.subr.mxu0 %v202
    %278 = vmatpush1.msra.mxu0 %v201
    %279 = vmatprep.subr.mxu0 0.0
    %280 = vmatpush2.msra.mxu0 0.0
    %281 = vmatprep.subr.mxu0 0.0
    %282 = vmatpush2.msra.mxu0 0.0
    %283 = vmatprep.subr.mxu0 0.0
    %284 = vmatpush2.msra.mxu0 0.0
    %285 = vmatprep.subr.mxu0 0.0
    %286 = vmatpush2.msra.mxu0 0.0
    %287 = vmatprep.subr.mxu0 0.0
    %288 = vmatpush2.msra.mxu0 0.0
    %289 = vmatprep.subr.mxu0 0.0
    %290 = vmatpush2.msra.mxu0 0.0
    %291 = vmatprep.subr.mxu0 0.0
    %292 = vmatpush2.msra.mxu0 0.0
    %293 = vmatprep.subr.mxu0 0.0
    %294 = vmatpush2.msra.mxu0 0.0
    %295 = vmatprep.subr.mxu0 0.0
    %296 = vmatpush2.msra.mxu0 0.0
    %297 = vmatprep.subr.mxu0 0.0
    %298 = vmatpush2.msra.mxu0 0.0
    %299 = vmatprep.subr.mxu0 0.0
    %300 = vmatpush2.msra.mxu0 0.0
    %301 = vmatprep.subr.mxu0 0.0
    %302 = vmatpush2.msra.mxu0 0.0
    %303 = vmatprep.subr.mxu0 0.0
    %304 = vmatpush2.msra.mxu0 0.0
    %305 = vmatprep.subr.mxu0 0.0
    %306 = vmatpush2.msra.mxu0 0.0
    %307 = vmatprep.subr.mxu0 %v236
    %308 = vmatpush2.msra.mxu0 %v235
    %309 = vmatprep.subr.mxu0 %v234
    %310 = vmatpush2.msra.mxu0 %v233
    %311 = vmatprep.mubr.f32.mxu0 %v239
    %312 = vmatmul.mubr.f32.gmra.mxu0 %v195
    %v313 = vpop.f32.mrf.mxu0
    %v314 = vadd.f32 0.0, %v313
    %v315 = vpop.f32.mrf.mxu0
    %v316 = vadd.f32 0.0, %v315
    %317 = vmatprep.mubr.f32.mxu0 %v242
    %318 = vmatmul.mubr.f32.gmra.mxu0 %v197
    %v319 = vpop.f32.mrf.mxu0
    %v320 = vadd.f32 0.0, %v319
    %v321 = vpop.f32.mrf.mxu0
    %v322 = vadd.f32 0.0, %v321
    %323 = vmatprep.mubr.f32.mxu0 %v245
    %324 = vmatmul.mubr.f32.gmra.mxu0 %v199
    %v325 = vpop.f32.mrf.mxu0
    %v326 = vadd.f32 0.0, %v325
    %v327 = vpop.f32.mrf.mxu0
    %v328 = vadd.f32 0.0, %v327
    %329 = vdwg.mxu0
    %v332 = vrot.slane %v185, 4
    %v333 = vrot.slane %v187, 4
    %v338 = vrot.slane %v314, 1
    %v339 = vrot.slane %v316, 1
    %v342 = vrot.slane %v185, 3
    %v343 = vrot.slane %v187, 3
    %vm348 = vcmask 1045504
    %v349 = vrot.slane %v314, 2
    %v350 = vrot.slane %v320, 2
    %v351 = vsel %vm348, %v349, %v350
    %v352 = vrot.slane %v316, 2
    %v353 = vrot.slane %v322, 2
    %v354 = vsel %vm348, %v352, %v353
    %v359 = vrot.slane %v185, 2
    %v360 = vrot.slane %v191, 2
    %v361 = vsel %vm348, %v359, %v360
    %v362 = vrot.slane %v187, 2
    %v363 = vrot.slane %v193, 2
    %v364 = vsel %vm348, %v362, %v363
    %v367 = vrot.slane %v320, 3
    %v368 = vrot.slane %v322, 3
    %v371 = vrot.slane %v191, 1
    %v372 = vrot.slane %v193, 1
    %vm377 = vcmask 1043456
    %v378 = vrot.slane %v320, 4
    %v379 = vrot.slane %v326, 4
    %v380 = vsel %vm377, %v378, %v379
    %v381 = vrot.slane %v322, 4
    %v382 = vrot.slane %v328, 4
    %v383 = vsel %vm377, %v381, %v382
    %v386 = vsel %vm377, %v89, %v332
    %v387 = vsel %vm377, %v90, %v333
    %vm388 = vcmask 1046528
    %v389 = vsel %vm388, %v386, %v338
    %v390 = vsel %vm388, %v387, %v339
    %v391 = vsel %vm377, %v338, %v89
    %v392 = vsel %vm377, %v339, %v90
    %vm393 = vcmask 1042432
    %v394 = vsel %vm393, %v342, %v351
    %v395 = vsel %vm393, %v343, %v354
    %v396 = vsel %vm377, %v91, %v361
    %v397 = vsel %vm377, %v92, %v364
    %v398 = vsel %vm388, %v396, %v367
    %v399 = vsel %vm388, %v397, %v368
    %v400 = vsel %vm377, %v367, %v91
    %v401 = vsel %vm377, %v368, %v92
    %v402 = vsel %vm393, %v371, %v380
    %v403 = vsel %vm393, %v372, %v383
    %404 = vst [vmem:[#allocation11] sm:$0xff] %v389
    %405 = vst [vmem:[#allocation11 + $0x8] sm:$0xff] %v390
    %406 = vst [vmem:[#allocation11 + $0x10] sm:$0xff] %v391
    %407 = vst [vmem:[#allocation11 + $0x18] sm:$0xff] %v392
    %408 = vst [vmem:[#allocation11 + $0x20] sm:$0xff] %v394
    %409 = vst [vmem:[#allocation11 + $0x28] sm:$0xff] %v395
    %410 = vst [vmem:[#allocation11 + $0x30] sm:$0xff] %v398
    %411 = vst [vmem:[#allocation11 + $0x38] sm:$0xff] %v399
    %412 = vst [vmem:[#allocation11 + $0x40] sm:$0xff] %v400
    %413 = vst [vmem:[#allocation11 + $0x48] sm:$0xff] %v401
    %414 = vst [vmem:[#allocation11 + $0x50] sm:$0xff] %v402
    %415 = vst [vmem:[#allocation11 + $0x58] sm:$0xff] %v403
    // Predicated region
    $region42: #{tpu_custom_call.1} parent=1 // pred_check
      _
    $region43: #{tpu_custom_call.1} parent=1 // pred_check_branch
      %417 = sbr.rel (0) target = $region45
    $region44: #{tpu_custom_call.1} parent=1 // pred_region
      %s419 = ssub.s32 1536, 1536
      %420 = vsyncadd [#allocation4], %s419
      %s421 = sshll.u32 [#allocation11], 4
      %s422 = int_to_ptr.vmem [resolvable:$true] %s421
      %427 = dma.vmem_to_hbm [thread:$0]  %s422, 1536, %s5, [#allocation4], 256, 256, 16
    $region45: #{tpu_custom_call.1} parent=1 // pred_fallthru
      _
    // Predicated region
    $region46: #{tpu_custom_call.1} parent=1 // pred_check
      _
    $region47: #{tpu_custom_call.1} parent=1 // pred_check_branch
      %429 = sbr.rel (0) target = $region49
    $region48: #{tpu_custom_call.1} parent=1 // pred_region
      %430 = dma.done [#allocation4], 1536
    $region49: #{tpu_custom_call.1} parent=1 // pred_fallthru
      _
    %431 = vsyncpa [#allocation3], 1
    %432 = vsyncpa [#allocation6], 1
    %433 = vsyncpa [#allocation9], 1
    %434 = vsyncpa [#allocation4], 1

// kernel: tpu_custom_call.1
$region0: #{tpu_custom_call.1}
  #allocation0 [shape = 'u32[]', space=smem, size = 0x4, offset = 0x4, fixed_abs, tag = 'smem constant byte address 0x4 - core index']
  #allocation1 [shape = 'u32[144,128]{1,0:T(1,128)}', space=vmem, size = 0x12000, scoped, tag = 'internal scratch']
  %s0 = inlined_call_operand.hbm [shape: f32[16,256], index: 0, kind: input, shape index: {}]
  %s1 = inlined_call_operand.hbm [shape: f32[12,64], index: 1, kind: input, shape index: {}]
  %s2 = inlined_call_operand.hbm [shape: f32[20,144], index: 2, kind: input, shape index: {}]
  %s3 = inlined_call_operand.hbm [shape: f32[64,256], index: 3, kind: input, shape index: {}]
  %s4 = inlined_call_operand.hbm [shape: f32[144,256], index: 4, kind: input, shape index: {}]
  %s5 = inlined_call_operand.hbm [shape: f32[48,256], index: 5, kind: output, shape index: {}]
  %s6 = sld [smem:[#allocation0]]
  $region50: #{tpu_custom_call.1} parent=0
    _
  %s8 = ssub.s32 1, %s6
  %s9 = scalar_select 0, %s8, %s6
  $region1: #{tpu_custom_call.1} parent=0
    #allocation2 [shape = 'u8[16384]{0}', space=vmem, size = 0x4000, scoped, tag = 'input window, operand 0, single buffered']
    #allocation3 [shape = 's32[1]{0}', space=sflag, size = 0x4, scoped, tag = 'scoped memory for tpu_custom_call.1']
    #allocation4 [shape = 's32[1]{0}', space=sflag, size = 0x4, scoped, tag = 'scoped memory for tpu_custom_call.1']
    #allocation5 [shape = 'u8[8192]{0}', space=vmem, size = 0x2000, scoped, tag = 'input window, operand 1, single buffered']
    #allocation6 [shape = 's32[1]{0}', space=sflag, size = 0x4, scoped, tag = 'scoped memory for tpu_custom_call.1']
    #allocation7 [shape = 'u8[24576]{0}', space=vmem, size = 0x6000, scoped, tag = 'input window, operand 2, single buffered']
    #allocation8 [shape = 'u8[65536]{0}', space=vmem, size = 0x10000, scoped, tag = 'input window, operand 3, single buffered']
    #allocation9 [shape = 's32[1]{0}', space=sflag, size = 0x4, scoped, tag = 'scoped memory for tpu_custom_call.1']
    #allocation10 [shape = 'u8[147456]{0}', space=vmem, size = 0x24000, scoped, tag = 'input window, operand 4, single buffered']
    #allocation11 [shape = 'u8[49152]{0}', space=vmem, size = 0xc000, scoped, tag = 'output window, operand 0, single buffered']
    %10 = vsyncpa [#allocation3], 0
    %11 = vsyncpa [#allocation6], 0
    %12 = vsyncpa [#allocation9], 0
    %13 = vsyncpa [#allocation4], 0
    // Predicated region
    $region2: #{tpu_custom_call.1} parent=1 // pred_check
      _
    $region3: #{tpu_custom_call.1} parent=1 // pred_check_branch
      %15 = sbr.rel (0) target = $region5
    $region4: #{tpu_custom_call.1} parent=1 // pred_region
      %s17 = ssub.s32 512, 512
      %18 = vsyncadd [#allocation3], %s17
      %s19 = sshll.u32 [#allocation2], 4
      %s20 = int_to_ptr.vmem [resolvable:$true] %s19
      %25 = dma.hbm_to_vmem [thread:$0]  %s0, 512, %s20, [#allocation3], 256, 256, 16
    $region5: #{tpu_custom_call.1} parent=1 // pred_fallthru
      _
    // Predicated region
    $region6: #{tpu_custom_call.1} parent=1 // pred_check
      _
    $region7: #{tpu_custom_call.1} parent=1 // pred_check_branch
      %27 = sbr.rel (0) target = $region9
    $region8: #{tpu_custom_call.1} parent=1 // pred_region
      %s29 = ssub.s32 256, 256
      %30 = vsyncadd [#allocation6], %s29
      %s31 = sshll.u32 [#allocation5], 4
      %s32 = int_to_ptr.vmem [resolvable:$true] %s31
      %37 = dma.hbm_to_vmem [thread:$0]  %s1, 256, %s32, [#allocation6], 128, 128, 8
    $region9: #{tpu_custom_call.1} parent=1 // pred_fallthru
      _
    // Predicated region
    $region10: #{tpu_custom_call.1} parent=1 // pred_check
      _
    $region11: #{tpu_custom_call.1} parent=1 // pred_check_branch
      %39 = sbr.rel (0) target = $region13
    $region12: #{tpu_custom_call.1} parent=1 // pred_region
      %s41 = ssub.s32 768, 768
      %42 = vsyncadd [#allocation6], %s41
      %s43 = sshll.u32 [#allocation7], 4
      %s44 = int_to_ptr.vmem [resolvable:$true] %s43
      %49 = dma.hbm_to_vmem [thread:$0]  %s2, 768, %s44, [#allocation6], 256, 256, 16
    $region13: #{tpu_custom_call.1} parent=1 // pred_fallthru
      _
    // Predicated region
    $region14: #{tpu_custom_call.1} parent=1 // pred_check
      _
    $region15: #{tpu_custom_call.1} parent=1 // pred_check_branch
      %51 = sbr.rel (0) target = $region17
    $region16: #{tpu_custom_call.1} parent=1 // pred_region
      %s53 = ssub.s32 2048, 2048
      %54 = vsyncadd [#allocation9], %s53
      %s55 = sshll.u32 [#allocation8], 4
      %s56 = int_to_ptr.vmem [resolvable:$true] %s55
      %61 = dma.hbm_to_vmem [thread:$0]  %s3, 2048, %s56, [#allocation9], 256, 256, 16
    $region17: #{tpu_custom_call.1} parent=1 // pred_fallthru
      _
    // Predicated region
    $region18: #{tpu_custom_call.1} parent=1 // pred_check
      _
    $region19: #{tpu_custom_call.1} parent=1 // pred_check_branch
      %63 = sbr.rel (0) target = $region21
    $region20: #{tpu_custom_call.1} parent=1 // pred_region
      %s65 = ssub.s32 4608, 4608
      %66 = vsyncadd [#allocation9], %s65
      %s67 = sshll.u32 [#allocation10], 4
      %s68 = int_to_ptr.vmem [resolvable:$true] %s67
      %73 = dma.hbm_to_vmem [thread:$0]  %s4, 4608, %s68, [#allocation9], 256, 256, 16
    $region21: #{tpu_custom_call.1} parent=1 // pred_fallthru
      _
    // Predicated region
    $region22: #{tpu_custom_call.1} parent=1 // pred_check
      _
    $region23: #{tpu_custom_call.1} parent=1 // pred_check_branch
      %75 = sbr.rel (0) target = $region25
    $region24: #{tpu_custom_call.1} parent=1 // pred_region
      %76 = dma.done [#allocation3], 512
    $region25: #{tpu_custom_call.1} parent=1 // pred_fallthru
      _
    // Predicated region
    $region26: #{tpu_custom_call.1} parent=1 // pred_check
      _
    $region27: #{tpu_custom_call.1} parent=1 // pred_check_branch
      %78 = sbr.rel (0) target = $region29
    $region28: #{tpu_custom_call.1} parent=1 // pred_region
      %79 = dma.done [#allocation6], 256
    $region29: #{tpu_custom_call.1} parent=1 // pred_fallthru
      _
    // Predicated region
    $region30: #{tpu_custom_call.1} parent=1 // pred_check
      _
    $region31: #{tpu_custom_call.1} parent=1 // pred_check_branch
      %81 = sbr.rel (0) target = $region33
    $region32: #{tpu_custom_call.1} parent=1 // pred_region
      %82 = dma.done [#allocation6], 768
    $region33: #{tpu_custom_call.1} parent=1 // pred_fallthru
      _
    // Predicated region
    $region34: #{tpu_custom_call.1} parent=1 // pred_check
      _
    $region35: #{tpu_custom_call.1} parent=1 // pred_check_branch
      %84 = sbr.rel (0) target = $region37
    $region36: #{tpu_custom_call.1} parent=1 // pred_region
      %85 = dma.done [#allocation9], 2048
    $region37: #{tpu_custom_call.1} parent=1 // pred_fallthru
      _
    // Predicated region
    $region38: #{tpu_custom_call.1} parent=1 // pred_check
      _
    $region39: #{tpu_custom_call.1} parent=1 // pred_check_branch
      %87 = sbr.rel (0) target = $region41
    $region40: #{tpu_custom_call.1} parent=1 // pred_region
      %88 = dma.done [#allocation9], 4608
    $region41: #{tpu_custom_call.1} parent=1 // pred_fallthru
      _
    %v89 = vld [vmem:[#allocation2] sm:$0xff]
    %v90 = vld [vmem:[#allocation2 + $0x8] sm:$0xff]
    %v91 = vld [vmem:[#allocation2 + $0x10] sm:$0xff]
    %v92 = vld [vmem:[#allocation2 + $0x18] sm:$0xff]
    %v93 = vld [vmem:[#allocation5] sm:$0xff]
    %v94 = vld [vmem:[#allocation5 + $0x8] sm:$0xf]
    %v95 = vld [vmem:[#allocation8] sm:$0xff]
    %v96 = vld [vmem:[#allocation8 + $0x8] sm:$0xff]
    %v97 = vld [vmem:[#allocation8 + $0x10] sm:$0xff]
    %v98 = vld [vmem:[#allocation8 + $0x18] sm:$0xff]
    %v99 = vld [vmem:[#allocation8 + $0x20] sm:$0xff]
    %v100 = vld [vmem:[#allocation8 + $0x28] sm:$0xff]
    %v101 = vld [vmem:[#allocation8 + $0x30] sm:$0xff]
    %v102 = vld [vmem:[#allocation8 + $0x38] sm:$0xff]
    %v103 = vld [vmem:[#allocation8 + $0x40] sm:$0xff]
    %v104 = vld [vmem:[#allocation8 + $0x48] sm:$0xff]
    %v105 = vld [vmem:[#allocation8 + $0x50] sm:$0xff]
    %v106 = vld [vmem:[#allocation8 + $0x58] sm:$0xff]
    %v107 = vld [vmem:[#allocation8 + $0x60] sm:$0xff]
    %v108 = vld [vmem:[#allocation8 + $0x68] sm:$0xff]
    %v109 = vld [vmem:[#allocation8 + $0x70] sm:$0xff]
    %v110 = vld [vmem:[#allocation8 + $0x78] sm:$0xff]
    %vm111 = vcmask 523264
    %v113 = vsel %vm111, %v93, 0
    %v116 = vsel %vm111, %v94, 0
    %118 = vmatprep.subr.mxu0 0.0
    %119 = vmatpush1.msra.mxu0 0.0
    %120 = vmatprep.subr.mxu0 0.0
    %121 = vmatpush1.msra.mxu0 0.0
    %122 = vmatprep.subr.mxu0 0.0
    %123 = vmatpush1.msra.mxu0 0.0
    %124 = vmatprep.subr.mxu0 0.0
    %125 = vmatpush1.msra.mxu0 0.0
    %126 = vmatprep.subr.mxu0 0.0
    %127 = vmatpush1.msra.mxu0 0.0
    %128 = vmatprep.subr.mxu0 0.0
    %129 = vmatpush1.msra.mxu0 0.0
    %130 = vmatprep.subr.mxu0 0.0
    %131 = vmatpush1.msra.mxu0 0.0
    %132 = vmatprep.subr.mxu0 0.0
    %133 = vmatpush1.msra.mxu0 0.0
    %134 = vmatprep.subr.mxu0 %v110
    %135 = vmatpush1.msra.mxu0 %v109
    %136 = vmatprep.subr.mxu0 %v108
    %137 = vmatpush1.msra.mxu0 %v107
    %138 = vmatprep.subr.mxu0 %v106
    %139 = vmatpush1.msra.mxu0 %v105
    %140 = vmatprep.subr.mxu0 %v104
    %141 = vmatpush1.msra.mxu0 %v103
    %142 = vmatprep.subr.mxu0 %v102
    %143 = vmatpush1.msra.mxu0 %v101
    %144 = vmatprep.subr.mxu0 %v100
    %145 = vmatpush1.msra.mxu0 %v99
    %146 = vmatprep.subr.mxu0 %v98
    %147 = vmatpush1.msra.mxu0 %v97
    %148 = vmatprep.subr.mxu0 %v96
    %149 = vmatpush1.msra.mxu0 %v95
    %150 = vmatprep.subr.mxu0 0.0
    %151 = vmatpush2.msra.mxu0 0.0
    %152 = vmatprep.subr.mxu0 0.0
    %153 = vmatpush2.msra.mxu0 0.0
    %154 = vmatprep.subr.mxu0 0.0
    %155 = vmatpush2.msra.mxu0 0.0
    %156 = vmatprep.subr.mxu0 0.0
    %157 = vmatpush2.msra.mxu0 0.0
    %158 = vmatprep.subr.mxu0 0.0
    %159 = vmatpush2.msra.mxu0 0.0
    %160 = vmatprep.subr.mxu0 0.0
    %161 = vmatpush2.msra.mxu0 0.0
    %162 = vmatprep.subr.mxu0 0.0
    %163 = vmatpush2.msra.mxu0 0.0
    %164 = vmatprep.subr.mxu0 0.0
    %165 = vmatpush2.msra.mxu0 0.0
    %166 = vmatprep.subr.mxu0 0.0
    %167 = vmatpush2.msra.mxu0 0.0
    %168 = vmatprep.subr.mxu0 0.0
    %169 = vmatpush2.msra.mxu0 0.0
    %170 = vmatprep.subr.mxu0 0.0
    %171 = vmatpush2.msra.mxu0 0.0
    %172 = vmatprep.subr.mxu0 0.0
    %173 = vmatpush2.msra.mxu0 0.0
    %174 = vmatprep.subr.mxu0 0.0
    %175 = vmatpush2.msra.mxu0 0.0
    %176 = vmatprep.subr.mxu0 0.0
    %177 = vmatpush2.msra.mxu0 0.0
    %178 = vmatprep.subr.mxu0 0.0
    %179 = vmatpush2.msra.mxu0 0.0
    %180 = vmatprep.subr.mxu0 0.0
    %181 = vmatpush2.msra.mxu0 0.0
    %182 = vmatprep.mubr.f32.mxu0 0.0
    %183 = vmatmul.mubr.f32.gmra.mxu0 %v113
    %v184 = vpop.f32.mrf.mxu0
    %v185 = vadd.f32 0.0, %v184
    %v186 = vpop.f32.mrf.mxu0
    %v187 = vadd.f32 0.0, %v186
    %188 = vmatprep.mubr.f32.mxu0 0.0
    %189 = vmatmul.mubr.f32.gmra.mxu0 %v116
    %v190 = vpop.f32.mrf.mxu0
    %v191 = vadd.f32 0.0, %v190
    %v192 = vpop.f32.mrf.mxu0
    %v193 = vadd.f32 0.0, %v192
    %194 = vdwg.mxu0
    %v195 = vld [vmem:[#allocation7] sm:$0xff]
    %v196 = vld [vmem:[#allocation7 + $0x8] sm:$0xff]
    %v197 = vld [vmem:[#allocation7 + $0x10] sm:$0xff]
    %v198 = vld [vmem:[#allocation7 + $0x18] sm:$0xff]
    %v199 = vld [vmem:[#allocation7 + $0x20] sm:$0xf]
    %v200 = vld [vmem:[#allocation7 + $0x28] sm:$0xf]
    %v201 = vld [vmem:[#allocation10] sm:$0xff]
    %v202 = vld [vmem:[#allocation10 + $0x8] sm:$0xff]
    %v203 = vld [vmem:[#allocation10 + $0x10] sm:$0xff]
    %v204 = vld [vmem:[#allocation10 + $0x18] sm:$0xff]
    %v205 = vld [vmem:[#allocation10 + $0x20] sm:$0xff]
    %v206 = vld [vmem:[#allocation10 + $0x28] sm:$0xff]
    %v207 = vld [vmem:[#allocation10 + $0x30] sm:$0xff]
    %v208 = vld [vmem:[#allocation10 + $0x38] sm:$0xff]
    %v209 = vld [vmem:[#allocation10 + $0x40] sm:$0xff]
    %v210 = vld [vmem:[#allocation10 + $0x48] sm:$0xff]
    %v211 = vld [vmem:[#allocation10 + $0x50] sm:$0xff]
    %v212 = vld [vmem:[#allocation10 + $0x58] sm:$0xff]
    %v213 = vld [vmem:[#allocation10 + $0x60] sm:$0xff]
    %v214 = vld [vmem:[#allocation10 + $0x68] sm:$0xff]
    %v215 = vld [vmem:[#allocation10 + $0x70] sm:$0xff]
    %v216 = vld [vmem:[#allocation10 + $0x78] sm:$0xff]
    %v217 = vld [vmem:[#allocation10 + $0x80] sm:$0xff]
    %v218 = vld [vmem:[#allocation10 + $0x88] sm:$0xff]
    %v219 = vld [vmem:[#allocation10 + $0x90] sm:$0xff]
    %v220 = vld [vmem:[#allocation10 + $0x98] sm:$0xff]
    %v221 = vld [vmem:[#allocation10 + $0xa0] sm:$0xff]
    %v222 = vld [vmem:[#allocation10 + $0xa8] sm:$0xff]
    %v223 = vld [vmem:[#allocation10 + $0xb0] sm:$0xff]
    %v224 = vld [vmem:[#allocation10 + $0xb8] sm:$0xff]
    %v225 = vld [vmem:[#allocation10 + $0xc0] sm:$0xff]
    %v226 = vld [vmem:[#allocation10 + $0xc8] sm:$0xff]
    %v227 = vld [vmem:[#allocation10 + $0xd0] sm:$0xff]
    %v228 = vld [vmem:[#allocation10 + $0xd8] sm:$0xff]
    %v229 = vld [vmem:[#allocation10 + $0xe0] sm:$0xff]
    %v230 = vld [vmem:[#allocation10 + $0xe8] sm:$0xff]
    %v231 = vld [vmem:[#allocation10 + $0xf0] sm:$0xff]
    %v232 = vld [vmem:[#allocation10 + $0xf8] sm:$0xff]
    %v233 = vld [vmem:[#allocation10 + $0x100] sm:$0xff]
    %v234 = vld [vmem:[#allocation10 + $0x108] sm:$0xff]
    %v235 = vld [vmem:[#allocation10 + $0x110] sm:$0xff]
    %v236 = vld [vmem:[#allocation10 + $0x118] sm:$0xff]
    %vm237 = vcmask 130048
    %v239 = vsel %vm237, %v196, 0
    %v242 = vsel %vm237, %v198, 0
    %v245 = vsel %vm237, %v200, 0
    %247 = vmatprep.subr.mxu0 %v232
    %248 = vmatpush1.msra.mxu0 %v231
    %249 = vmatprep.subr.mxu0 %v230
    %250 = vmatpush1.msra.mxu0 %v229
    %251 = vmatprep.subr.mxu0 %v228
    %252 = vmatpush1.msra.mxu0 %v227
    %253 = vmatprep.subr.mxu0 %v226
    %254 = vmatpush1.msra.mxu0 %v225
    %255 = vmatprep.subr.mxu0 %v224
    %256 = vmatpush1.msra.mxu0 %v223
    %257 = vmatprep.subr.mxu0 %v222
    %258 = vmatpush1.msra.mxu0 %v221
    %259 = vmatprep.subr.mxu0 %v220
    %260 = vmatpush1.msra.mxu0 %v219
    %261 = vmatprep.subr.mxu0 %v218
    %262 = vmatpush1.msra.mxu0 %v217
    %263 = vmatprep.subr.mxu0 %v216
    %264 = vmatpush1.msra.mxu0 %v215
    %265 = vmatprep.subr.mxu0 %v214
    %266 = vmatpush1.msra.mxu0 %v213
    %267 = vmatprep.subr.mxu0 %v212
    %268 = vmatpush1.msra.mxu0 %v211
    %269 = vmatprep.subr.mxu0 %v210
    %270 = vmatpush1.msra.mxu0 %v209
    %271 = vmatprep.subr.mxu0 %v208
    %272 = vmatpush1.msra.mxu0 %v207
    %273 = vmatprep.subr.mxu0 %v206
    %274 = vmatpush1.msra.mxu0 %v205
    %275 = vmatprep.subr.mxu0 %v204
    %276 = vmatpush1.msra.mxu0 %v203
    %277 = vmatprep.subr.mxu0 %v202
    %278 = vmatpush1.msra.mxu0 %v201
    %279 = vmatprep.subr.mxu0 0.0
    %280 = vmatpush2.msra.mxu0 0.0
    %281 = vmatprep.subr.mxu0 0.0
    %282 = vmatpush2.msra.mxu0 0.0
    %283 = vmatprep.subr.mxu0 0.0
    %284 = vmatpush2.msra.mxu0 0.0
    %285 = vmatprep.subr.mxu0 0.0
    %286 = vmatpush2.msra.mxu0 0.0
    %287 = vmatprep.subr.mxu0 0.0
    %288 = vmatpush2.msra.mxu0 0.0
    %289 = vmatprep.subr.mxu0 0.0
    %290 = vmatpush2.msra.mxu0 0.0
    %291 = vmatprep.subr.mxu0 0.0
    %292 = vmatpush2.msra.mxu0 0.0
    %293 = vmatprep.subr.mxu0 0.0
    %294 = vmatpush2.msra.mxu0 0.0
    %295 = vmatprep.subr.mxu0 0.0
    %296 = vmatpush2.msra.mxu0 0.0
    %297 = vmatprep.subr.mxu0 0.0
    %298 = vmatpush2.msra.mxu0 0.0
    %299 = vmatprep.subr.mxu0 0.0
    %300 = vmatpush2.msra.mxu0 0.0
    %301 = vmatprep.subr.mxu0 0.0
    %302 = vmatpush2.msra.mxu0 0.0
    %303 = vmatprep.subr.mxu0 0.0
    %304 = vmatpush2.msra.mxu0 0.0
    %305 = vmatprep.subr.mxu0 0.0
    %306 = vmatpush2.msra.mxu0 0.0
    %307 = vmatprep.subr.mxu0 %v236
    %308 = vmatpush2.msra.mxu0 %v235
    %309 = vmatprep.subr.mxu0 %v234
    %310 = vmatpush2.msra.mxu0 %v233
    %311 = vmatprep.mubr.f32.mxu0 %v239
    %312 = vmatmul.mubr.f32.gmra.mxu0 %v195
    %v313 = vpop.f32.mrf.mxu0
    %v314 = vadd.f32 0.0, %v313
    %v315 = vpop.f32.mrf.mxu0
    %v316 = vadd.f32 0.0, %v315
    %317 = vmatprep.mubr.f32.mxu0 %v242
    %318 = vmatmul.mubr.f32.gmra.mxu0 %v197
    %v319 = vpop.f32.mrf.mxu0
    %v320 = vadd.f32 0.0, %v319
    %v321 = vpop.f32.mrf.mxu0
    %v322 = vadd.f32 0.0, %v321
    %323 = vmatprep.mubr.f32.mxu0 %v245
    %324 = vmatmul.mubr.f32.gmra.mxu0 %v199
    %v325 = vpop.f32.mrf.mxu0
    %v326 = vadd.f32 0.0, %v325
    %v327 = vpop.f32.mrf.mxu0
    %v328 = vadd.f32 0.0, %v327
    %329 = vdwg.mxu0
    %v332 = vrot.slane %v185, 4
    %v333 = vrot.slane %v187, 4
    %v338 = vrot.slane %v314, 1
    %v339 = vrot.slane %v316, 1
    %v342 = vrot.slane %v185, 3
    %v343 = vrot.slane %v187, 3
    %vm348 = vcmask 1045504
    %v349 = vrot.slane %v314, 2
    %v350 = vrot.slane %v320, 2
    %v351 = vsel %vm348, %v349, %v350
    %v352 = vrot.slane %v316, 2
    %v353 = vrot.slane %v322, 2
    %v354 = vsel %vm348, %v352, %v353
    %v359 = vrot.slane %v185, 2
    %v360 = vrot.slane %v191, 2
    %v361 = vsel %vm348, %v359, %v360
    %v362 = vrot.slane %v187, 2
    %v363 = vrot.slane %v193, 2
    %v364 = vsel %vm348, %v362, %v363
    %v367 = vrot.slane %v320, 3
    %v368 = vrot.slane %v322, 3
    %v371 = vrot.slane %v191, 1
    %v372 = vrot.slane %v193, 1
    %vm377 = vcmask 1043456
    %v378 = vrot.slane %v320, 4
    %v379 = vrot.slane %v326, 4
    %v380 = vsel %vm377, %v378, %v379
    %v381 = vrot.slane %v322, 4
    %v382 = vrot.slane %v328, 4
    %v383 = vsel %vm377, %v381, %v382
    %v386 = vsel %vm377, %v89, %v332
    %v387 = vsel %vm377, %v90, %v333
    %vm388 = vcmask 1046528
    %v389 = vsel %vm388, %v386, %v338
    %v390 = vsel %vm388, %v387, %v339
    %v391 = vsel %vm377, %v338, %v89
    %v392 = vsel %vm377, %v339, %v90
    %vm393 = vcmask 1042432
    %v394 = vsel %vm393, %v342, %v351
    %v395 = vsel %vm393, %v343, %v354
    %v396 = vsel %vm377, %v91, %v361
    %v397 = vsel %vm377, %v92, %v364
    %v398 = vsel %vm388, %v396, %v367
    %v399 = vsel %vm388, %v397, %v368
    %v400 = vsel %vm377, %v367, %v91
    %v401 = vsel %vm377, %v368, %v92
    %v402 = vsel %vm393, %v371, %v380
    %v403 = vsel %vm393, %v372, %v383
    %404 = vst [vmem:[#allocation11] sm:$0xff] %v389
    %405 = vst [vmem:[#allocation11 + $0x8] sm:$0xff] %v390
    %406 = vst [vmem:[#allocation11 + $0x10] sm:$0xff] %v391
    %407 = vst [vmem:[#allocation11 + $0x18] sm:$0xff] %v392
    %408 = vst [vmem:[#allocation11 + $0x20] sm:$0xff] %v394
    %409 = vst [vmem:[#allocation11 + $0x28] sm:$0xff] %v395
    %410 = vst [vmem:[#allocation11 + $0x30] sm:$0xff] %v398
    %411 = vst [vmem:[#allocation11 + $0x38] sm:$0xff] %v399
    %412 = vst [vmem:[#allocation11 + $0x40] sm:$0xff] %v400
    %413 = vst [vmem:[#allocation11 + $0x48] sm:$0xff] %v401
    %414 = vst [vmem:[#allocation11 + $0x50] sm:$0xff] %v402
    %415 = vst [vmem:[#allocation11 + $0x58] sm:$0xff] %v403
    // Predicated region
    $region42: #{tpu_custom_call.1} parent=1 // pred_check
      _
    $region43: #{tpu_custom_call.1} parent=1 // pred_check_branch
      %417 = sbr.rel (0) target = $region45
    $region44: #{tpu_custom_call.1} parent=1 // pred_region
      %s419 = ssub.s32 1536, 1536
      %420 = vsyncadd [#allocation4], %s419
      %s421 = sshll.u32 [#allocation11], 4
      %s422 = int_to_ptr.vmem [resolvable:$true] %s421
      %427 = dma.vmem_to_hbm [thread:$0]  %s422, 1536, %s5, [#allocation4], 256, 256, 16
    $region45: #{tpu_custom_call.1} parent=1 // pred_fallthru
      _
    // Predicated region
    $region46: #{tpu_custom_call.1} parent=1 // pred_check
      _
    $region47: #{tpu_custom_call.1} parent=1 // pred_check_branch
      %429 = sbr.rel (0) target = $region49
    $region48: #{tpu_custom_call.1} parent=1 // pred_region
      %430 = dma.done [#allocation4], 1536
    $region49: #{tpu_custom_call.1} parent=1 // pred_fallthru
      _
    %431 = vsyncpa [#allocation3], 1
    %432 = vsyncpa [#allocation6], 1
    %433 = vsyncpa [#allocation9], 1
    %434 = vsyncpa [#allocation4], 1

</llo_original>
